<compile_context>
chip_gen: v7x
topology: tpu7x:2x2x1
jax: 0.10.0
libtpu: 0.0.40
codegen_flags: <defaults>
</compile_context>

<pallas_src>
import jax
import jax.numpy as jnp
from jax.experimental import pallas as pl
from jax.experimental.pallas import tpu as pltpu

# ---------------- synthetic model dims (small, as in the original port) -----
B = 2            # batch
C_IN = 4         # obs channels
HW = 16          # obs spatial size
K = 3            # conv kernel
STRIDE = 2
PAD = 1
C_OUT = 8        # conv out channels
OHW = (HW + 2 * PAD - K) // STRIDE + 1      # 8
CONV_FLAT = C_OUT * OHW * OHW               # 512
N_MSMS = 8       # measurement features
H_OBS = 32       # obs-head hidden
H_MSM = 16       # measurement-head hidden
RNN_SIZE = 32    # get_rnn_size(cfg) == core hidden == encoder output

N_PIX = B * OHW * OHW                       # 128 conv output pixels (lanes)
N_TAPS = K * K * C_IN                       # 36 im2col taps

# ---------------- data-slab layout (per-call input, [48, 128]) --------------
PATCH_ROWS = 40      # rows 0:36 = patchT taps, row 36 = ones (conv bias), 37:40 pad
MSM_R0 = 40          # rows 40:42 = msms (lanes 0:8) + ones lane 8 (msm bias)
DATA_ROWS = 48

# ---------------- weight-slab layout (packed offline, [240, 128]) -----------
WCT_R0 = 0           # conv weight^T [8, 36] + b_conv in column 36
W1_R0 = 8            # obs-head weight, 4 lane-blocks of [128, 32]   (rows 8:136)
W2_R0 = 136          # msm-head weight [8, 16] + b2 row              (rows 136:145)
W3A_R0 = 152         # fusion FC (obs part)  [32, 32]
W3B_R0 = 184         # fusion FC (msm part)  [16, 32]
WI_R0 = 200          # GRU [w_ir | w_iz | w_in] packed [32, 96]
(R_B1, R_B3, R_BR, R_BZ, R_BNI, R_BNH, R_WV, R_BV) = range(232, 240)
W_ROWS = 240


# ---------------- fused Pallas kernel ----------------------------------------
def _fused_kernel(data_ref, w_ref, out_ref, flat_ref):
    dot = lambda a, b: jnp.dot(a, b, preferred_element_type=jnp.float32)

    # ---- Conv2d(4->8, k=3, s=2, p=1) + bias + ReLU: ONE MXU dot -------------
    # Host-built im2col operand is lane-dense [40, 128]; the conv bias rides in
    # via the all-ones patch row (column 36 of the transposed conv weight).
    # Output arrives already "transposed": [C_OUT=8, B*OH*OW=128] -> one vreg.
    conv_t = jnp.maximum(
        dot(w_ref[WCT_R0:WCT_R0 + C_OUT, 0:PATCH_ROWS],
            data_ref[0:PATCH_ROWS, :]), 0.0)

    # ---- bridge to the PyTorch channel-major flatten order ------------------
    # (b,pos) lives in lanes and c in sublanes, so one relayout of the 4 KiB of
    # conv activations is unavoidable; done as 16 static 64-lane scratch stores
    # (no 128x128 transpose, no accumulator traffic, nothing leaves VMEM).
    hw = OHW * OHW
    for c in range(C_OUT):
        for b in range(B):
            flat_ref[b:b + 1, c * hw:(c + 1) * hw] = \
                conv_t[c:c + 1, b * hw:(b + 1) * hw]
    flat = flat_ref[...]                                        # [B, 512]

    # ---- encoder: obs head (w1 as 4 lane-dense [128,32] blocks) -------------
    w1 = w_ref[W1_R0:W1_R0 + 128, :]
    obs_h = (dot(flat[:, 0:128],   w1[:, 0:32])
             + dot(flat[:, 128:256], w1[:, 32:64])
             + dot(flat[:, 256:384], w1[:, 64:96])
             + dot(flat[:, 384:512], w1[:, 96:128]))
    obs_h = jnp.maximum(obs_h + w_ref[R_B1:R_B1 + 1, 0:H_OBS], 0.0)

    # ---- encoder: measurement head (b2 folded via ones column) --------------
    msm_h = jnp.maximum(
        dot(data_ref[MSM_R0:MSM_R0 + B, 0:N_MSMS + 1],
            w_ref[W2_R0:W2_R0 + N_MSMS + 1, 0:H_MSM]), 0.0)

    # ---- encoder: fusion FC --------------------------------------------------
    enc = jnp.maximum(
        dot(obs_h, w_ref[W3A_R0:W3A_R0 + H_OBS, 0:RNN_SIZE])
        + dot(msm_h, w_ref[W3B_R0:W3B_R0 + H_MSM, 0:RNN_SIZE])
        + w_ref[R_B3:R_B3 + 1, 0:RNN_SIZE], 0.0)

    # ---- core: one GRU step driven by the fake all-zero rnn state -----------
    # h0 == 0 exactly, so the hidden-state matmuls, the h0 broadcast and the
    # z*h0 term vanish; only the hidden biases survive (r/z pre-summed).
    gates = dot(enc, w_ref[WI_R0:WI_R0 + RNN_SIZE, 0:3 * RNN_SIZE])   # [B, 96]
    r = jax.nn.sigmoid(gates[:, 0:RNN_SIZE]
                       + w_ref[R_BR:R_BR + 1, 0:RNN_SIZE])
    z = jax.nn.sigmoid(gates[:, RNN_SIZE:2 * RNN_SIZE]
                       + w_ref[R_BZ:R_BZ + 1, 0:RNN_SIZE])
    n = jnp.tanh(gates[:, 2 * RNN_SIZE:3 * RNN_SIZE]
                 + w_ref[R_BNI:R_BNI + 1, 0:RNN_SIZE]
                 + r * w_ref[R_BNH:R_BNH + 1, 0:RNN_SIZE])
    h = (1.0 - z) * n                                   # + z * h0, and h0 == 0

    # ---- critic: VPU multiply + lane reduction -------------------------------
    out_ref[...] = (jnp.sum(h * w_ref[R_WV:R_WV + 1, 0:RNN_SIZE],
                            axis=-1, keepdims=True)
                    + w_ref[R_BV:R_BV + 1, 0:1])


# ---------------- wrapper -----------------------------------------------------
def measured_value_ffn(obs, msms, packed):
    """Fused forward pass: encoder(conv+msm+fusion) -> GRU(h0=0) -> critic."""
    # Host-side im2col (one tiny fused XLA op on ~4 KiB of data):
    # patchT[(kh*3+kw)*C_IN + cin, b*64 + oh*8 + ow] = xpad[b, cin, 2oh+kh, 2ow+kw]
    xpad = jnp.pad(obs, ((0, 0), (0, 0), (PAD, PAD), (PAD, PAD)))   # [B,C,18,18]
    taps = [xpad[:, :, kh:kh + 2 * OHW:STRIDE, kw:kw + 2 * OHW:STRIDE]
            for kh in range(K) for kw in range(K)]                  # 9 x [B,C,8,8]
    patch_t = (jnp.stack(taps, axis=0)                              # [9,B,C,8,8]
               .transpose(0, 2, 1, 3, 4)                            # [9,C,B,8,8]
               .reshape(N_TAPS, N_PIX))                             # [36,128]

    data = jnp.zeros((DATA_ROWS, N_PIX), jnp.float32)
    data = data.at[0:N_TAPS, :].set(patch_t)
    data = data.at[N_TAPS, :].set(1.0)                    # ones tap -> conv bias
    data = data.at[MSM_R0:MSM_R0 + B, 0:N_MSMS].set(msms)
    data = data.at[MSM_R0:MSM_R0 + B, N_MSMS].set(1.0)    # ones col -> msm bias

    vmem = lambda: pl.BlockSpec(memory_space=pltpu.MemorySpace.VMEM)
    return pl.pallas_call(
        _fused_kernel,
        out_shape=jax.ShapeDtypeStruct((B, 1), jnp.float32),
        in_specs=[vmem(), vmem()],
        out_specs=vmem(),
        scratch_shapes=[pltpu.VMEM((B, CONV_FLAT), jnp.float32)],
    )(data, packed["w_slab"])


# ---------------- one-time offline parameter packing -------------------------
def pack_params(p):
    """Pack ALL weights and biases into one lane-dense [240, 128] slab.
    Correctness of the conv stage relies on unused slab lanes/rows being zero
    (they multiply zero-padded patch rows); keep that invariant."""
    w = jnp.zeros((W_ROWS, 128), jnp.float32)

    # conv weight transposed: wct[o, (kh*3+kw)*C_IN + cin]; column 36 = b_conv
    wct = p["w_conv"].transpose(0, 2, 3, 1).reshape(C_OUT, N_TAPS)
    w = w.at[WCT_R0:WCT_R0 + C_OUT, 0:N_TAPS].set(wct)
    w = w.at[WCT_R0:WCT_R0 + C_OUT, N_TAPS].set(p["b_conv"])

    # w1 re-blocked lane-dense: w1_blk[r, g*32+j] = w1[g*128+r, j]
    w1b = p["w1"].reshape(4, 128, H_OBS).transpose(1, 0, 2).reshape(128, 4 * H_OBS)
    w = w.at[W1_R0:W1_R0 + 128, 0:128].set(w1b)

    # msm head (+ bias row for the ones column)
    w = w.at[W2_R0:W2_R0 + N_MSMS, 0:H_MSM].set(p["w2"])
    w = w.at[W2_R0 + N_MSMS, 0:H_MSM].set(p["b2"].reshape(-1))

    # fusion FC
    w = w.at[W3A_R0:W3A_R0 + H_OBS, 0:RNN_SIZE].set(p["w3a"])
    w = w.at[W3B_R0:W3B_R0 + H_MSM, 0:RNN_SIZE].set(p["w3b"])

    # GRU input-gate weights packed [32, 96]
    w_i = jnp.concatenate([p["w_ir"], p["w_iz"], p["w_in"]], axis=1)
    w = w.at[WI_R0:WI_R0 + RNN_SIZE, 0:3 * RNN_SIZE].set(w_i)

    # bias rows (+ critic weight row / bias)
    w = w.at[R_B1, 0:H_OBS].set(p["b1"].reshape(-1))
    w = w.at[R_B3, 0:RNN_SIZE].set(p["b3"].reshape(-1))
    w = w.at[R_BR, 0:RNN_SIZE].set((p["b_ir"] + p["b_hr"]).reshape(-1))
    w = w.at[R_BZ, 0:RNN_SIZE].set((p["b_iz"] + p["b_hz"]).reshape(-1))
    w = w.at[R_BNI, 0:RNN_SIZE].set(p["b_in"].reshape(-1))
    w = w.at[R_BNH, 0:RNN_SIZE].set(p["b_hn"].reshape(-1))
    w = w.at[R_WV, 0:RNN_SIZE].set(p["w_v"].reshape(-1))
    w = w.at[R_BV, 0:1].set(p["b_v"].reshape(-1))
    return {"w_slab": w}


# ---------------- synthetic params + pure-JAX reference ----------------------
def init_params(key):
    def dense(k, shape):
        fan_in = shape[0] if len(shape) == 2 else shape[1] * shape[2] * shape[3]
        return jax.random.normal(k, shape, jnp.float32) / jnp.sqrt(float(fan_in))

    w_shapes = [
        ("w_conv", (C_OUT, C_IN, K, K)),
        ("w1", (CONV_FLAT, H_OBS)), ("w2", (N_MSMS, H_MSM)),
        ("w3a", (H_OBS, RNN_SIZE)), ("w3b", (H_MSM, RNN_SIZE)),
        ("w_ir", (RNN_SIZE, RNN_SIZE)), ("w_iz", (RNN_SIZE, RNN_SIZE)),
        ("w_in", (RNN_SIZE, RNN_SIZE)),
        ("w_hr", (RNN_SIZE, RNN_SIZE)), ("w_hz", (RNN_SIZE, RNN_SIZE)),
        ("w_hn", (RNN_SIZE, RNN_SIZE)),
        ("w_v", (RNN_SIZE, 1)),
    ]
    b_shapes = [
        ("b_conv", (C_OUT,)), ("b1", (1, H_OBS)), ("b2", (1, H_MSM)),
        ("b3", (1, RNN_SIZE)),
        ("b_ir", (1, RNN_SIZE)), ("b_iz", (1, RNN_SIZE)), ("b_in", (1, RNN_SIZE)),
        ("b_hr", (1, RNN_SIZE)), ("b_hz", (1, RNN_SIZE)), ("b_hn", (1, RNN_SIZE)),
        ("b_v", (1, 1)),
    ]
    keys = jax.random.split(key, len(w_shapes) + len(b_shapes))
    params = {n: dense(k, s) for (n, s), k in zip(w_shapes, keys)}
    params.update({n: 0.1 * jax.random.normal(k, s, jnp.float32)
                   for (n, s), k in zip(b_shapes, keys[len(w_shapes):])})
    return params


def reference_forward(obs, msms, p):
    """Plain-JAX reference with the full (un-simplified) module semantics."""
    co = jax.lax.conv_general_dilated(
        obs, p["w_conv"], window_strides=(STRIDE, STRIDE),
        padding=((PAD, PAD), (PAD, PAD)),
        dimension_numbers=("NCHW", "OIHW", "NCHW"))
    co = jnp.maximum(co + p["b_conv"].reshape(1, C_OUT, 1, 1), 0.0)
    flat = co.reshape(B, CONV_FLAT)                      # torch flatten(1)
    obs_h = jnp.maximum(flat @ p["w1"] + p["b1"], 0.0)
    msm_h = jnp.maximum(msms @ p["w2"] + p["b2"], 0.0)
    enc = jnp.maximum(obs_h @ p["w3a"] + msm_h @ p["w3b"] + p["b3"], 0.0)
    h0 = jnp.zeros((B, RNN_SIZE), jnp.float32)           # fake_rnn_states
    r = jax.nn.sigmoid(enc @ p["w_ir"] + p["b_ir"] + h0 @ p["w_hr"] + p["b_hr"])
    z = jax.nn.sigmoid(enc @ p["w_iz"] + p["b_iz"] + h0 @ p["w_hz"] + p["b_hz"])
    n = jnp.tanh(enc @ p["w_in"] + p["b_in"] + r * (h0 @ p["w_hn"] + p["b_hn"]))
    h = (1.0 - z) * n + z * h0
    return h @ p["w_v"] + p["b_v"]


if __name__ == "__main__":
    key = jax.random.PRNGKey(0)
    k_obs, k_msm, k_par = jax.random.split(key, 3)
    obs = jax.random.normal(k_obs, (B, C_IN, HW, HW), jnp.float32)   # nobs
    msms = jax.random.normal(k_msm, (B, N_MSMS), jnp.float32)        # msms
    params = init_params(k_par)
    packed = pack_params(params)             # one-time offline packing

    value = jax.jit(measured_value_ffn)(obs, msms, packed)
    value = jax.block_until_ready(value)
    assert value.shape == (B, 1) and value.dtype == jnp.float32

    with jax.default_matmul_precision("highest"):
        ref = reference_forward(obs, msms, params)
    assert jnp.allclose(value, ref, atol=2e-3, rtol=2e-3), (value, ref)
    print("KERNEL_OK")
</pallas_src>

<mosaic_0001>
module attributes {stable_mosaic.version = 11 : i64} {
  func.func @_fused_kernel(%arg0: memref<48x128xf32, #tpu.memory_space<vmem>>, %arg1: memref<240x128xf32, #tpu.memory_space<vmem>>, %arg2: memref<2x1xf32, #tpu.memory_space<vmem>>, %arg3: memref<2x512xf32, #tpu.memory_space<vmem>>) attributes {dimension_semantics = [], scalar_prefetch = 0 : i64, scratch_operands = 1 : i64, tpu.core_type = #tpu.core_type<tc>} {
    %c0 = arith.constant 0 : index
    %c0_0 = arith.constant 0 : index
    %0 = vector.load %arg1[%c0, %c0_0] : memref<240x128xf32, #tpu.memory_space<vmem>>, vector<8x40xf32>
    %c0_1 = arith.constant 0 : index
    %c0_2 = arith.constant 0 : index
    %1 = vector.load %arg0[%c0_1, %c0_2] : memref<48x128xf32, #tpu.memory_space<vmem>>, vector<40x128xf32>
    %cst = arith.constant dense<0.000000e+00> : vector<8x128xf32>
    %2 = tpu.matmul %0, %1, %cst {dimension_numbers = #tpu.dot_dimension_numbers<[1], [0], [0], [1], [0, 0, 1, 1], [], []>} : vector<8x40xf32>, vector<40x128xf32>, vector<8x128xf32> -> vector<8x128xf32>
    %cst_3 = arith.constant 0.000000e+00 : f32
    %3 = vector.broadcast %cst_3 : f32 to vector<8x128xf32>
    %4 = arith.maximumf %2, %3 : vector<8x128xf32>
    %5 = vector.extract_strided_slice %4 {offsets = [0, 0], sizes = [1, 64], strides = [1, 1]} : vector<8x128xf32> to vector<1x64xf32>
    %c0_4 = arith.constant 0 : index
    %c0_5 = arith.constant 0 : index
    %6 = vector.load %arg3[%c0_4, %c0_5] : memref<2x512xf32, #tpu.memory_space<vmem>>, vector<1x64xf32>
    tpu.vector_store %arg3[%c0_4, %c0_5], %5 {strides = array<i32>} : memref<2x512xf32, #tpu.memory_space<vmem>>, vector<1x64xf32>,
    %7 = vector.extract_strided_slice %4 {offsets = [0, 64], sizes = [1, 64], strides = [1, 1]} : vector<8x128xf32> to vector<1x64xf32>
    %c1 = arith.constant 1 : index
    %c0_6 = arith.constant 0 : index
    %8 = vector.load %arg3[%c1, %c0_6] : memref<2x512xf32, #tpu.memory_space<vmem>>, vector<1x64xf32>
    tpu.vector_store %arg3[%c1, %c0_6], %7 {strides = array<i32>} : memref<2x512xf32, #tpu.memory_space<vmem>>, vector<1x64xf32>,
    %9 = vector.extract_strided_slice %4 {offsets = [1, 0], sizes = [1, 64], strides = [1, 1]} : vector<8x128xf32> to vector<1x64xf32>
    %c0_7 = arith.constant 0 : index
    %c64 = arith.constant 64 : index
    %10 = vector.load %arg3[%c0_7, %c64] : memref<2x512xf32, #tpu.memory_space<vmem>>, vector<1x64xf32>
    tpu.vector_store %arg3[%c0_7, %c64], %9 {strides = array<i32>} : memref<2x512xf32, #tpu.memory_space<vmem>>, vector<1x64xf32>,
    %11 = vector.extract_strided_slice %4 {offsets = [1, 64], sizes = [1, 64], strides = [1, 1]} : vector<8x128xf32> to vector<1x64xf32>
    %c1_8 = arith.constant 1 : index
    %c64_9 = arith.constant 64 : index
    %12 = vector.load %arg3[%c1_8, %c64_9] : memref<2x512xf32, #tpu.memory_space<vmem>>, vector<1x64xf32>
    tpu.vector_store %arg3[%c1_8, %c64_9], %11 {strides = array<i32>} : memref<2x512xf32, #tpu.memory_space<vmem>>, vector<1x64xf32>,
    %13 = vector.extract_strided_slice %4 {offsets = [2, 0], sizes = [1, 64], strides = [1, 1]} : vector<8x128xf32> to vector<1x64xf32>
    %c0_10 = arith.constant 0 : index
    %c128 = arith.constant 128 : index
    %14 = vector.load %arg3[%c0_10, %c128] : memref<2x512xf32, #tpu.memory_space<vmem>>, vector<1x64xf32>
    tpu.vector_store %arg3[%c0_10, %c128], %13 {strides = array<i32>} : memref<2x512xf32, #tpu.memory_space<vmem>>, vector<1x64xf32>,
    %15 = vector.extract_strided_slice %4 {offsets = [2, 64], sizes = [1, 64], strides = [1, 1]} : vector<8x128xf32> to vector<1x64xf32>
    %c1_11 = arith.constant 1 : index
    %c128_12 = arith.constant 128 : index
    %16 = vector.load %arg3[%c1_11, %c128_12] : memref<2x512xf32, #tpu.memory_space<vmem>>, vector<1x64xf32>
    tpu.vector_store %arg3[%c1_11, %c128_12], %15 {strides = array<i32>} : memref<2x512xf32, #tpu.memory_space<vmem>>, vector<1x64xf32>,
    %17 = vector.extract_strided_slice %4 {offsets = [3, 0], sizes = [1, 64], strides = [1, 1]} : vector<8x128xf32> to vector<1x64xf32>
    %c0_13 = arith.constant 0 : index
    %c192 = arith.constant 192 : index
    %18 = vector.load %arg3[%c0_13, %c192] : memref<2x512xf32, #tpu.memory_space<vmem>>, vector<1x64xf32>
    tpu.vector_store %arg3[%c0_13, %c192], %17 {strides = array<i32>} : memref<2x512xf32, #tpu.memory_space<vmem>>, vector<1x64xf32>,
    %19 = vector.extract_strided_slice %4 {offsets = [3, 64], sizes = [1, 64], strides = [1, 1]} : vector<8x128xf32> to vector<1x64xf32>
    %c1_14 = arith.constant 1 : index
    %c192_15 = arith.constant 192 : index
    %20 = vector.load %arg3[%c1_14, %c192_15] : memref<2x512xf32, #tpu.memory_space<vmem>>, vector<1x64xf32>
    tpu.vector_store %arg3[%c1_14, %c192_15], %19 {strides = array<i32>} : memref<2x512xf32, #tpu.memory_space<vmem>>, vector<1x64xf32>,
    %21 = vector.extract_strided_slice %4 {offsets = [4, 0], sizes = [1, 64], strides = [1, 1]} : vector<8x128xf32> to vector<1x64xf32>
    %c0_16 = arith.constant 0 : index
    %c256 = arith.constant 256 : index
    %22 = vector.load %arg3[%c0_16, %c256] : memref<2x512xf32, #tpu.memory_space<vmem>>, vector<1x64xf32>
    tpu.vector_store %arg3[%c0_16, %c256], %21 {strides = array<i32>} : memref<2x512xf32, #tpu.memory_space<vmem>>, vector<1x64xf32>,
    %23 = vector.extract_strided_slice %4 {offsets = [4, 64], sizes = [1, 64], strides = [1, 1]} : vector<8x128xf32> to vector<1x64xf32>
    %c1_17 = arith.constant 1 : index
    %c256_18 = arith.constant 256 : index
    %24 = vector.load %arg3[%c1_17, %c256_18] : memref<2x512xf32, #tpu.memory_space<vmem>>, vector<1x64xf32>
    tpu.vector_store %arg3[%c1_17, %c256_18], %23 {strides = array<i32>} : memref<2x512xf32, #tpu.memory_space<vmem>>, vector<1x64xf32>,
    %25 = vector.extract_strided_slice %4 {offsets = [5, 0], sizes = [1, 64], strides = [1, 1]} : vector<8x128xf32> to vector<1x64xf32>
    %c0_19 = arith.constant 0 : index
    %c320 = arith.constant 320 : index
    %26 = vector.load %arg3[%c0_19, %c320] : memref<2x512xf32, #tpu.memory_space<vmem>>, vector<1x64xf32>
    tpu.vector_store %arg3[%c0_19, %c320], %25 {strides = array<i32>} : memref<2x512xf32, #tpu.memory_space<vmem>>, vector<1x64xf32>,
    %27 = vector.extract_strided_slice %4 {offsets = [5, 64], sizes = [1, 64], strides = [1, 1]} : vector<8x128xf32> to vector<1x64xf32>
    %c1_20 = arith.constant 1 : index
    %c320_21 = arith.constant 320 : index
    %28 = vector.load %arg3[%c1_20, %c320_21] : memref<2x512xf32, #tpu.memory_space<vmem>>, vector<1x64xf32>
    tpu.vector_store %arg3[%c1_20, %c320_21], %27 {strides = array<i32>} : memref<2x512xf32, #tpu.memory_space<vmem>>, vector<1x64xf32>,
    %29 = vector.extract_strided_slice %4 {offsets = [6, 0], sizes = [1, 64], strides = [1, 1]} : vector<8x128xf32> to vector<1x64xf32>
    %c0_22 = arith.constant 0 : index
    %c384 = arith.constant 384 : index
    %30 = vector.load %arg3[%c0_22, %c384] : memref<2x512xf32, #tpu.memory_space<vmem>>, vector<1x64xf32>
    tpu.vector_store %arg3[%c0_22, %c384], %29 {strides = array<i32>} : memref<2x512xf32, #tpu.memory_space<vmem>>, vector<1x64xf32>,
    %31 = vector.extract_strided_slice %4 {offsets = [6, 64], sizes = [1, 64], strides = [1, 1]} : vector<8x128xf32> to vector<1x64xf32>
    %c1_23 = arith.constant 1 : index
    %c384_24 = arith.constant 384 : index
    %32 = vector.load %arg3[%c1_23, %c384_24] : memref<2x512xf32, #tpu.memory_space<vmem>>, vector<1x64xf32>
    tpu.vector_store %arg3[%c1_23, %c384_24], %31 {strides = array<i32>} : memref<2x512xf32, #tpu.memory_space<vmem>>, vector<1x64xf32>,
    %33 = vector.extract_strided_slice %4 {offsets = [7, 0], sizes = [1, 64], strides = [1, 1]} : vector<8x128xf32> to vector<1x64xf32>
    %c0_25 = arith.constant 0 : index
    %c448 = arith.constant 448 : index
    %34 = vector.load %arg3[%c0_25, %c448] : memref<2x512xf32, #tpu.memory_space<vmem>>, vector<1x64xf32>
    tpu.vector_store %arg3[%c0_25, %c448], %33 {strides = array<i32>} : memref<2x512xf32, #tpu.memory_space<vmem>>, vector<1x64xf32>,
    %35 = vector.extract_strided_slice %4 {offsets = [7, 64], sizes = [1, 64], strides = [1, 1]} : vector<8x128xf32> to vector<1x64xf32>
    %c1_26 = arith.constant 1 : index
    %c448_27 = arith.constant 448 : index
    %36 = vector.load %arg3[%c1_26, %c448_27] : memref<2x512xf32, #tpu.memory_space<vmem>>, vector<1x64xf32>
    tpu.vector_store %arg3[%c1_26, %c448_27], %35 {strides = array<i32>} : memref<2x512xf32, #tpu.memory_space<vmem>>, vector<1x64xf32>,
    %c0_28 = arith.constant 0 : index
    %c0_29 = arith.constant 0 : index
    %37 = vector.load %arg3[%c0_28, %c0_29] : memref<2x512xf32, #tpu.memory_space<vmem>>, vector<2x512xf32>
    %c8 = arith.constant 8 : index
    %c0_30 = arith.constant 0 : index
    %38 = vector.load %arg1[%c8, %c0_30] : memref<240x128xf32, #tpu.memory_space<vmem>>, vector<128x128xf32>
    %39 = vector.extract_strided_slice %37 {offsets = [0, 0], sizes = [2, 128], strides = [1, 1]} : vector<2x512xf32> to vector<2x128xf32>
    %40 = vector.extract_strided_slice %38 {offsets = [0, 0], sizes = [128, 32], strides = [1, 1]} : vector<128x128xf32> to vector<128x32xf32>
    %cst_31 = arith.constant dense<0.000000e+00> : vector<2x32xf32>
    %41 = tpu.matmul %39, %40, %cst_31 {dimension_numbers = #tpu.dot_dimension_numbers<[1], [0], [0], [1], [0, 0, 1, 1], [], []>} : vector<2x128xf32>, vector<128x32xf32>, vector<2x32xf32> -> vector<2x32xf32>
    %42 = vector.extract_strided_slice %37 {offsets = [0, 128], sizes = [2, 128], strides = [1, 1]} : vector<2x512xf32> to vector<2x128xf32>
    %43 = vector.extract_strided_slice %38 {offsets = [0, 32], sizes = [128, 32], strides = [1, 1]} : vector<128x128xf32> to vector<128x32xf32>
    %cst_32 = arith.constant dense<0.000000e+00> : vector<2x32xf32>
    %44 = tpu.matmul %42, %43, %cst_32 {dimension_numbers = #tpu.dot_dimension_numbers<[1], [0], [0], [1], [0, 0, 1, 1], [], []>} : vector<2x128xf32>, vector<128x32xf32>, vector<2x32xf32> -> vector<2x32xf32>
    %45 = arith.addf %41, %44 : vector<2x32xf32>
    %46 = vector.extract_strided_slice %37 {offsets = [0, 256], sizes = [2, 128], strides = [1, 1]} : vector<2x512xf32> to vector<2x128xf32>
    %47 = vector.extract_strided_slice %38 {offsets = [0, 64], sizes = [128, 32], strides = [1, 1]} : vector<128x128xf32> to vector<128x32xf32>
    %cst_33 = arith.constant dense<0.000000e+00> : vector<2x32xf32>
    %48 = tpu.matmul %46, %47, %cst_33 {dimension_numbers = #tpu.dot_dimension_numbers<[1], [0], [0], [1], [0, 0, 1, 1], [], []>} : vector<2x128xf32>, vector<128x32xf32>, vector<2x32xf32> -> vector<2x32xf32>
    %49 = arith.addf %45, %48 : vector<2x32xf32>
    %50 = vector.extract_strided_slice %37 {offsets = [0, 384], sizes = [2, 128], strides = [1, 1]} : vector<2x512xf32> to vector<2x128xf32>
    %51 = vector.extract_strided_slice %38 {offsets = [0, 96], sizes = [128, 32], strides = [1, 1]} : vector<128x128xf32> to vector<128x32xf32>
    %cst_34 = arith.constant dense<0.000000e+00> : vector<2x32xf32>
    %52 = tpu.matmul %50, %51, %cst_34 {dimension_numbers = #tpu.dot_dimension_numbers<[1], [0], [0], [1], [0, 0, 1, 1], [], []>} : vector<2x128xf32>, vector<128x32xf32>, vector<2x32xf32> -> vector<2x32xf32>
    %53 = arith.addf %49, %52 : vector<2x32xf32>
    %c232 = arith.constant 232 : index
    %c0_35 = arith.constant 0 : index
    %54 = vector.load %arg1[%c232, %c0_35] : memref<240x128xf32, #tpu.memory_space<vmem>>, vector<1x32xf32>
    %55 = vector.broadcast %54 : vector<1x32xf32> to vector<2x32xf32>
    %56 = arith.addf %53, %55 : vector<2x32xf32>
    %cst_36 = arith.constant 0.000000e+00 : f32
    %57 = vector.broadcast %cst_36 : f32 to vector<2x32xf32>
    %58 = arith.maximumf %56, %57 : vector<2x32xf32>
    %c40 = arith.constant 40 : index
    %c0_37 = arith.constant 0 : index
    %59 = vector.load %arg0[%c40, %c0_37] : memref<48x128xf32, #tpu.memory_space<vmem>>, vector<2x9xf32>
    %c136 = arith.constant 136 : index
    %c0_38 = arith.constant 0 : index
    %60 = vector.load %arg1[%c136, %c0_38] : memref<240x128xf32, #tpu.memory_space<vmem>>, vector<9x16xf32>
    %cst_39 = arith.constant dense<0.000000e+00> : vector<2x16xf32>
    %61 = tpu.matmul %59, %60, %cst_39 {dimension_numbers = #tpu.dot_dimension_numbers<[1], [0], [0], [1], [0, 0, 1, 1], [], []>} : vector<2x9xf32>, vector<9x16xf32>, vector<2x16xf32> -> vector<2x16xf32>
    %cst_40 = arith.constant 0.000000e+00 : f32
    %62 = vector.broadcast %cst_40 : f32 to vector<2x16xf32>
    %63 = arith.maximumf %61, %62 : vector<2x16xf32>
    %c152 = arith.constant 152 : index
    %c0_41 = arith.constant 0 : index
    %64 = vector.load %arg1[%c152, %c0_41] : memref<240x128xf32, #tpu.memory_space<vmem>>, vector<32x32xf32>
    %cst_42 = arith.constant dense<0.000000e+00> : vector<2x32xf32>
    %65 = tpu.matmul %58, %64, %cst_42 {dimension_numbers = #tpu.dot_dimension_numbers<[1], [0], [0], [1], [0, 0, 1, 1], [], []>} : vector<2x32xf32>, vector<32x32xf32>, vector<2x32xf32> -> vector<2x32xf32>
    %c184 = arith.constant 184 : index
    %c0_43 = arith.constant 0 : index
    %66 = vector.load %arg1[%c184, %c0_43] : memref<240x128xf32, #tpu.memory_space<vmem>>, vector<16x32xf32>
    %cst_44 = arith.constant dense<0.000000e+00> : vector<2x32xf32>
    %67 = tpu.matmul %63, %66, %cst_44 {dimension_numbers = #tpu.dot_dimension_numbers<[1], [0], [0], [1], [0, 0, 1, 1], [], []>} : vector<2x16xf32>, vector<16x32xf32>, vector<2x32xf32> -> vector<2x32xf32>
    %68 = arith.addf %65, %67 : vector<2x32xf32>
    %c233 = arith.constant 233 : index
    %c0_45 = arith.constant 0 : index
    %69 = vector.load %arg1[%c233, %c0_45] : memref<240x128xf32, #tpu.memory_space<vmem>>, vector<1x32xf32>
    %70 = vector.broadcast %69 : vector<1x32xf32> to vector<2x32xf32>
    %71 = arith.addf %68, %70 : vector<2x32xf32>
    %cst_46 = arith.constant 0.000000e+00 : f32
    %72 = vector.broadcast %cst_46 : f32 to vector<2x32xf32>
    %73 = arith.maximumf %71, %72 : vector<2x32xf32>
    %c200 = arith.constant 200 : index
    %c0_47 = arith.constant 0 : index
    %74 = vector.load %arg1[%c200, %c0_47] : memref<240x128xf32, #tpu.memory_space<vmem>>, vector<32x96xf32>
    %cst_48 = arith.constant dense<0.000000e+00> : vector<2x96xf32>
    %75 = tpu.matmul %73, %74, %cst_48 {dimension_numbers = #tpu.dot_dimension_numbers<[1], [0], [0], [1], [0, 0, 1, 1], [], []>} : vector<2x32xf32>, vector<32x96xf32>, vector<2x96xf32> -> vector<2x96xf32>
    %76 = vector.extract_strided_slice %75 {offsets = [0, 0], sizes = [2, 32], strides = [1, 1]} : vector<2x96xf32> to vector<2x32xf32>
    %c234 = arith.constant 234 : index
    %c0_49 = arith.constant 0 : index
    %77 = vector.load %arg1[%c234, %c0_49] : memref<240x128xf32, #tpu.memory_space<vmem>>, vector<1x32xf32>
    %78 = vector.broadcast %77 : vector<1x32xf32> to vector<2x32xf32>
    %79 = arith.addf %76, %78 : vector<2x32xf32>
    %80 = arith.negf %79 : vector<2x32xf32>
    %81 = math.exp %80 : vector<2x32xf32>
    %cst_50 = arith.constant 1.000000e+00 : f32
    %82 = vector.broadcast %cst_50 : f32 to vector<2x32xf32>
    %83 = arith.addf %82, %81 : vector<2x32xf32>
    %84 = arith.divf %82, %83 : vector<2x32xf32>
    %85 = vector.extract_strided_slice %75 {offsets = [0, 32], sizes = [2, 32], strides = [1, 1]} : vector<2x96xf32> to vector<2x32xf32>
    %c235 = arith.constant 235 : index
    %c0_51 = arith.constant 0 : index
    %86 = vector.load %arg1[%c235, %c0_51] : memref<240x128xf32, #tpu.memory_space<vmem>>, vector<1x32xf32>
    %87 = vector.broadcast %86 : vector<1x32xf32> to vector<2x32xf32>
    %88 = arith.addf %85, %87 : vector<2x32xf32>
    %89 = arith.negf %88 : vector<2x32xf32>
    %90 = math.exp %89 : vector<2x32xf32>
    %cst_52 = arith.constant 1.000000e+00 : f32
    %91 = vector.broadcast %cst_52 : f32 to vector<2x32xf32>
    %92 = arith.addf %91, %90 : vector<2x32xf32>
    %93 = arith.divf %91, %92 : vector<2x32xf32>
    %94 = vector.extract_strided_slice %75 {offsets = [0, 64], sizes = [2, 32], strides = [1, 1]} : vector<2x96xf32> to vector<2x32xf32>
    %c236 = arith.constant 236 : index
    %c0_53 = arith.constant 0 : index
    %95 = vector.load %arg1[%c236, %c0_53] : memref<240x128xf32, #tpu.memory_space<vmem>>, vector<1x32xf32>
    %96 = vector.broadcast %95 : vector<1x32xf32> to vector<2x32xf32>
    %97 = arith.addf %94, %96 : vector<2x32xf32>
    %c237 = arith.constant 237 : index
    %c0_54 = arith.constant 0 : index
    %98 = vector.load %arg1[%c237, %c0_54] : memref<240x128xf32, #tpu.memory_space<vmem>>, vector<1x32xf32>
    %99 = vector.broadcast %98 : vector<1x32xf32> to vector<2x32xf32>
    %100 = arith.mulf %84, %99 : vector<2x32xf32>
    %101 = arith.addf %97, %100 : vector<2x32xf32>
    %102 = math.tanh %101 : vector<2x32xf32>
    %cst_55 = arith.constant 1.000000e+00 : f32
    %103 = vector.broadcast %cst_55 : f32 to vector<2x32xf32>
    %104 = arith.subf %103, %93 : vector<2x32xf32>
    %105 = arith.mulf %104, %102 : vector<2x32xf32>
    %c238 = arith.constant 238 : index
    %c0_56 = arith.constant 0 : index
    %106 = vector.load %arg1[%c238, %c0_56] : memref<240x128xf32, #tpu.memory_space<vmem>>, vector<1x32xf32>
    %107 = vector.broadcast %106 : vector<1x32xf32> to vector<2x32xf32>
    %108 = arith.mulf %105, %107 : vector<2x32xf32>
    %cst_57 = arith.constant dense<0.000000e+00> : vector<2xf32>
    %109 = vector.multi_reduction <add>, %108, %cst_57 [1] : vector<2x32xf32> to vector<2xf32>
    %110 = vector.shape_cast %109 : vector<2xf32> to vector<2x1xf32>
    %c239 = arith.constant 239 : index
    %c0_58 = arith.constant 0 : index
    %111 = vector.load %arg1[%c239, %c0_58] : memref<240x128xf32, #tpu.memory_space<vmem>>, vector<1x1xf32>
    %112 = vector.broadcast %111 : vector<1x1xf32> to vector<2x1xf32>
    %113 = arith.addf %110, %112 : vector<2x1xf32>
    %c0_59 = arith.constant 0 : index
    %c0_60 = arith.constant 0 : index
    %114 = vector.load %arg2[%c0_59, %c0_60] : memref<2x1xf32, #tpu.memory_space<vmem>>, vector<2x1xf32>
    tpu.vector_store %arg2[%c0_59, %c0_60], %113 {strides = array<i32>} : memref<2x1xf32, #tpu.memory_space<vmem>>, vector<2x1xf32>,
    return
  }
}

</mosaic_0001>

<llo_original>
// kernel: measured_value_ffn.1
$region0: #{measured_value_ffn.1}
  #allocation0 [shape = 'u32[]', space=smem, size = 0x4, offset = 0x4, fixed_abs, tag = 'smem constant byte address 0x4 - core index']
  #allocation1 [shape = 'u32[144,128]{1,0:T(1,128)}', space=vmem, size = 0x12000, scoped, tag = 'internal scratch']
  #allocation2 [shape = 'f32[2,512]{1,0:T(2,128)}', space=vmem, size = 0x1000, scoped, tag = 'scratch operand']
  %s0 = inlined_call_operand.vmem [shape: f32[48,128], index: 0, kind: input, shape index: {}]
  %s1 = inlined_call_operand.vmem [shape: f32[240,128], index: 1, kind: input, shape index: {}]
  %s2 = inlined_call_operand.vmem [shape: f32[2,1], index: 2, kind: output, shape index: {}]
  %s3 = sld [smem:[#allocation0]]
  $region18: #{measured_value_ffn.1} parent=0
    _
  %s5 = ssub.s32 1, %s3
  %s6 = scalar_select 0, %s5, %s3
  // Predicated region
  $region2: #{measured_value_ffn.1} parent=0 // pred_check
    _
  $region3: #{measured_value_ffn.1} parent=0 // pred_check_branch
    %8 = sbr.rel (0) target = $region5
  $region4: #{measured_value_ffn.1} parent=0 // pred_region
    _
  $region5: #{measured_value_ffn.1} parent=0 // pred_fallthru
    _
  // Predicated region
  $region6: #{measured_value_ffn.1} parent=0 // pred_check
    _
  $region7: #{measured_value_ffn.1} parent=0 // pred_check_branch
    %10 = sbr.rel (0) target = $region9
  $region8: #{measured_value_ffn.1} parent=0 // pred_region
    _
  $region9: #{measured_value_ffn.1} parent=0 // pred_fallthru
    _
  %v11 = vld [vmem:[%s1] sm:$0xff]
  %v12 = vld [vmem:[%s0] sm:$0xff]
  %v13 = vld [vmem:[%s0 + $0x8] sm:$0xff]
  %v14 = vld [vmem:[%s0 + $0x10] sm:$0xff]
  %v15 = vld [vmem:[%s0 + $0x18] sm:$0xff]
  %v16 = vld [vmem:[%s0 + $0x20] sm:$0xff]
  %vm17 = vcmask 326656
  %v19 = vsel %vm17, %v11, 0
  %21 = vmatprep.subr.mxu0 0.0
  %22 = vmatpush1.msra.mxu0 %v12
  %23 = vmatprep.subr.mxu0 0.0
  %24 = vmatpush1.msra.mxu0 %v13
  %25 = vmatprep.subr.mxu0 0.0
  %26 = vmatpush1.msra.mxu0 %v14
  %27 = vmatprep.subr.mxu0 0.0
  %28 = vmatpush1.msra.mxu0 %v15
  %29 = vmatprep.subr.mxu0 0.0
  %30 = vmatpush1.msra.mxu0 %v16
  %31 = vmatprep.subr.mxu0 0.0
  %32 = vmatpush1.msra.mxu0 0.0
  %33 = vmatprep.subr.mxu0 0.0
  %34 = vmatpush1.msra.mxu0 0.0
  %35 = vmatprep.subr.mxu0 0.0
  %36 = vmatpush1.msra.mxu0 0.0
  %37 = vmatprep.subr.mxu0 0.0
  %38 = vmatpush1.msra.mxu0 0.0
  %39 = vmatprep.subr.mxu0 0.0
  %40 = vmatpush1.msra.mxu0 0.0
  %41 = vmatprep.subr.mxu0 0.0
  %42 = vmatpush1.msra.mxu0 0.0
  %43 = vmatprep.subr.mxu0 0.0
  %44 = vmatpush1.msra.mxu0 0.0
  %45 = vmatprep.subr.mxu0 0.0
  %46 = vmatpush1.msra.mxu0 0.0
  %47 = vmatprep.subr.mxu0 0.0
  %48 = vmatpush1.msra.mxu0 0.0
  %49 = vmatprep.subr.mxu0 0.0
  %50 = vmatpush1.msra.mxu0 0.0
  %51 = vmatprep.subr.mxu0 0.0
  %52 = vmatpush1.msra.mxu0 0.0
  %53 = vmatprep.subr.mxu0 0.0
  %54 = vmatpush1.msra.mxu0 0.0
  %55 = vmatprep.subr.mxu0 0.0
  %56 = vmatpush1.msra.mxu0 0.0
  %57 = vmatprep.subr.mxu0 0.0
  %58 = vmatpush1.msra.mxu0 0.0
  %59 = vmatprep.subr.mxu0 0.0
  %60 = vmatpush1.msra.mxu0 0.0
  %61 = vmatprep.subr.mxu0 0.0
  %62 = vmatpush1.msra.mxu0 0.0
  %63 = vmatprep.subr.mxu0 0.0
  %64 = vmatpush1.msra.mxu0 0.0
  %65 = vmatprep.subr.mxu0 0.0
  %66 = vmatpush1.msra.mxu0 0.0
  %67 = vmatprep.subr.mxu0 0.0
  %68 = vmatpush1.msra.mxu0 0.0
  %69 = vmatprep.subr.mxu0 0.0
  %70 = vmatpush1.msra.mxu0 0.0
  %71 = vmatprep.subr.mxu0 0.0
  %72 = vmatpush1.msra.mxu0 0.0
  %73 = vmatprep.subr.mxu0 0.0
  %74 = vmatpush1.msra.mxu0 0.0
  %75 = vmatprep.subr.mxu0 0.0
  %76 = vmatpush1.msra.mxu0 0.0
  %77 = vmatprep.subr.mxu0 0.0
  %78 = vmatpush1.msra.mxu0 0.0
  %79 = vmatprep.subr.mxu0 0.0
  %80 = vmatpush1.msra.mxu0 0.0
  %81 = vmatprep.subr.mxu0 0.0
  %82 = vmatpush1.msra.mxu0 0.0
  %83 = vmatprep.subr.mxu0 0.0
  %84 = vmatpush1.msra.mxu0 0.0
  %85 = vmatprep.mubr.f32.mxu0 0.0
  %86 = vmatmul.mubr.f32.gmra.mrb[0].mxu0 %v19
  %v87 = vpop.f32.mrb[0].mxu0
  %v88 = vadd.f32 0.0, %v87
  %v89 = vpop.f32.mrb[0].mxu0
  %90 = vdwg.mxu0
  %v91 = vmax.f32 %v88, 0.0
  %vm92 = vcmask 516096
  %93 = vst.msk [vmem:[#allocation2] sm:$0x1] %vm92, %v91
  %v96 = vunpack.c.l.s4 1983009808
  %v97 = vunpack.c.0.s8 %v96
  %v98 = vlaneseq
  %v99 = vshrl.u32 %v98, 7
  %v100 = vsub.s32 %v97, %v99
  %v101 = vrot.slane %v91, %v100
  %102 = vrot.lane.b32.xlu0 %v101, 64
  %v103 = vpop.permute.xlu0 %102
  %105 = vst.msk [vmem:[#allocation2 + $0x1] sm:$0x1] %vm92, %v103
  %v106 = vrot.slane %v101, 7
  %v107 = vrot.slane %v106, 2
  %108 = vrot.lane.b32.xlu0 %v107, 64
  %v109 = vpop.permute.xlu0 %108
  %vm111 = vcmask 1040896
  %112 = vst.msk [vmem:[#allocation2] sm:$0x1] %vm111, %v109
  %114 = vst.msk [vmem:[#allocation2 + $0x1] sm:$0x1] %vm111, %v107
  %v115 = vcombine.high %v101, %v101
  %117 = vst.msk [vmem:[#allocation2 + $0x2] sm:$0x1] %vm92, %v115
  %118 = vrot.lane.b32.xlu0 %v115, 64
  %v119 = vpop.permute.xlu0 %118
  %121 = vst.msk [vmem:[#allocation2 + $0x3] sm:$0x1] %vm92, %v119
  %v122 = vrot.slane %v115, 7
  %v123 = vrot.slane %v122, 2
  %124 = vrot.lane.b32.xlu0 %v123, 64
  %v125 = vpop.permute.xlu0 %124
  %127 = vst.msk [vmem:[#allocation2 + $0x2] sm:$0x1] %vm111, %v125
  %129 = vst.msk [vmem:[#allocation2 + $0x3] sm:$0x1] %vm111, %v123
  %v130 = vcombine.high %v91, %v91
  %v132 = vunpack.c.l.s4 1983009808
  %v133 = vunpack.c.0.s8 %v132
  %v134 = vlaneseq
  %v135 = vshrl.u32 %v134, 7
  %v136 = vsub.s32 %v133, %v135
  %v137 = vrot.slane %v130, %v136
  %139 = vst.msk [vmem:[#allocation2 + $0x4] sm:$0x1] %vm92, %v137
  %140 = vrot.lane.b32.xlu0 %v137, 64
  %v141 = vpop.permute.xlu0 %140
  %143 = vst.msk [vmem:[#allocation2 + $0x5] sm:$0x1] %vm92, %v141
  %v144 = vrot.slane %v137, 7
  %v145 = vrot.slane %v144, 2
  %146 = vrot.lane.b32.xlu0 %v145, 64
  %v147 = vpop.permute.xlu0 %146
  %149 = vst.msk [vmem:[#allocation2 + $0x4] sm:$0x1] %vm111, %v147
  %151 = vst.msk [vmem:[#allocation2 + $0x5] sm:$0x1] %vm111, %v145
  %v152 = vcombine.high %v137, %v137
  %154 = vst.msk [vmem:[#allocation2 + $0x6] sm:$0x1] %vm92, %v152
  %155 = vrot.lane.b32.xlu0 %v152, 64
  %v156 = vpop.permute.xlu0 %155
  %158 = vst.msk [vmem:[#allocation2 + $0x7] sm:$0x1] %vm92, %v156
  %v159 = vrot.slane %v152, 7
  %v160 = vrot.slane %v159, 2
  %161 = vrot.lane.b32.xlu0 %v160, 64
  %v162 = vpop.permute.xlu0 %161
  %164 = vst.msk [vmem:[#allocation2 + $0x6] sm:$0x1] %vm111, %v162
  %166 = vst.msk [vmem:[#allocation2 + $0x7] sm:$0x1] %vm111, %v160
  %v167 = vld [vmem:[#allocation2] sm:$0xff]
  %v168 = vld [vmem:[%s1 + $0x8] sm:$0xff]
  %v169 = vld [vmem:[%s1 + $0x10] sm:$0xff]
  %v170 = vld [vmem:[%s1 + $0x18] sm:$0xff]
  %v171 = vld [vmem:[%s1 + $0x20] sm:$0xff]
  %v172 = vld [vmem:[%s1 + $0x28] sm:$0xff]
  %v173 = vld [vmem:[%s1 + $0x30] sm:$0xff]
  %v174 = vld [vmem:[%s1 + $0x38] sm:$0xff]
  %v175 = vld [vmem:[%s1 + $0x40] sm:$0xff]
  %v176 = vld [vmem:[%s1 + $0x48] sm:$0xff]
  %v177 = vld [vmem:[%s1 + $0x50] sm:$0xff]
  %v178 = vld [vmem:[%s1 + $0x58] sm:$0xff]
  %v179 = vld [vmem:[%s1 + $0x60] sm:$0xff]
  %v180 = vld [vmem:[%s1 + $0x68] sm:$0xff]
  %v181 = vld [vmem:[%s1 + $0x70] sm:$0xff]
  %v182 = vld [vmem:[%s1 + $0x78] sm:$0xff]
  %v183 = vld [vmem:[%s1 + $0x80] sm:$0xff]
  %v186 = vunpack.c.l.s4 1983009808
  %v187 = vunpack.c.0.s8 %v186
  %v188 = vlaneseq
  %v189 = vshrl.u32 %v188, 7
  %v190 = vsub.s32 %v187, %v189
  %v191 = vrot.slane %v167, %v190
  %v192 = vcombine.high %v191, %v191
  %210 = vrot.lane.b32.xlu0 %v168, 96
  %v211 = vpop.permute.xlu0 %210
  %212 = vrot.lane.b32.xlu0 %v169, 96
  %v213 = vpop.permute.xlu0 %212
  %214 = vrot.lane.b32.xlu0 %v170, 96
  %v215 = vpop.permute.xlu0 %214
  %216 = vrot.lane.b32.xlu0 %v171, 96
  %v217 = vpop.permute.xlu0 %216
  %218 = vrot.lane.b32.xlu0 %v172, 96
  %v219 = vpop.permute.xlu0 %218
  %220 = vrot.lane.b32.xlu0 %v173, 96
  %v221 = vpop.permute.xlu0 %220
  %222 = vrot.lane.b32.xlu0 %v174, 96
  %v223 = vpop.permute.xlu0 %222
  %224 = vrot.lane.b32.xlu0 %v175, 96
  %v225 = vpop.permute.xlu0 %224
  %226 = vrot.lane.b32.xlu0 %v176, 96
  %v227 = vpop.permute.xlu0 %226
  %228 = vrot.lane.b32.xlu0 %v177, 96
  %v229 = vpop.permute.xlu0 %228
  %230 = vrot.lane.b32.xlu0 %v178, 96
  %v231 = vpop.permute.xlu0 %230
  %232 = vrot.lane.b32.xlu0 %v179, 96
  %v233 = vpop.permute.xlu0 %232
  %234 = vrot.lane.b32.xlu0 %v180, 96
  %v235 = vpop.permute.xlu0 %234
  %236 = vrot.lane.b32.xlu0 %v181, 96
  %v237 = vpop.permute.xlu0 %236
  %238 = vrot.lane.b32.xlu0 %v182, 96
  %v239 = vpop.permute.xlu0 %238
  %240 = vrot.lane.b32.xlu0 %v183, 96
  %v241 = vpop.permute.xlu0 %240
  %258 = vmatprep.subr.mxu0 0.0
  %259 = vmatpush1.msra.mxu0 %v211
  %260 = vmatprep.subr.mxu0 0.0
  %261 = vmatpush1.msra.mxu0 %v213
  %262 = vmatprep.subr.mxu0 0.0
  %263 = vmatpush1.msra.mxu0 %v215
  %264 = vmatprep.subr.mxu0 0.0
  %265 = vmatpush1.msra.mxu0 %v217
  %266 = vmatprep.subr.mxu0 0.0
  %267 = vmatpush1.msra.mxu0 %v219
  %268 = vmatprep.subr.mxu0 0.0
  %269 = vmatpush1.msra.mxu0 %v221
  %270 = vmatprep.subr.mxu0 0.0
  %271 = vmatpush1.msra.mxu0 %v223
  %272 = vmatprep.subr.mxu0 0.0
  %273 = vmatpush1.msra.mxu0 %v225
  %274 = vmatprep.subr.mxu0 0.0
  %275 = vmatpush1.msra.mxu0 %v227
  %276 = vmatprep.subr.mxu0 0.0
  %277 = vmatpush1.msra.mxu0 %v229
  %278 = vmatprep.subr.mxu0 0.0
  %279 = vmatpush1.msra.mxu0 %v231
  %280 = vmatprep.subr.mxu0 0.0
  %281 = vmatpush1.msra.mxu0 %v233
  %282 = vmatprep.subr.mxu0 0.0
  %283 = vmatpush1.msra.mxu0 %v235
  %284 = vmatprep.subr.mxu0 0.0
  %285 = vmatpush1.msra.mxu0 %v237
  %286 = vmatprep.subr.mxu0 0.0
  %287 = vmatpush1.msra.mxu0 %v239
  %288 = vmatprep.subr.mxu0 0.0
  %289 = vmatpush1.msra.mxu0 %v241
  %290 = vmatprep.subr.mxu0 0.0
  %291 = vmatpush1.msra.mxu0 0.0
  %292 = vmatprep.subr.mxu0 0.0
  %293 = vmatpush1.msra.mxu0 0.0
  %294 = vmatprep.subr.mxu0 0.0
  %295 = vmatpush1.msra.mxu0 0.0
  %296 = vmatprep.subr.mxu0 0.0
  %297 = vmatpush1.msra.mxu0 0.0
  %298 = vmatprep.subr.mxu0 0.0
  %299 = vmatpush1.msra.mxu0 0.0
  %300 = vmatprep.subr.mxu0 0.0
  %301 = vmatpush1.msra.mxu0 0.0
  %302 = vmatprep.subr.mxu0 0.0
  %303 = vmatpush1.msra.mxu0 0.0
  %304 = vmatprep.subr.mxu0 0.0
  %305 = vmatpush1.msra.mxu0 0.0
  %306 = vmatprep.subr.mxu0 0.0
  %307 = vmatpush1.msra.mxu0 0.0
  %308 = vmatprep.subr.mxu0 0.0
  %309 = vmatpush1.msra.mxu0 0.0
  %310 = vmatprep.subr.mxu0 0.0
  %311 = vmatpush1.msra.mxu0 0.0
  %312 = vmatprep.subr.mxu0 0.0
  %313 = vmatpush1.msra.mxu0 0.0
  %314 = vmatprep.subr.mxu0 0.0
  %315 = vmatpush1.msra.mxu0 0.0
  %316 = vmatprep.subr.mxu0 0.0
  %317 = vmatpush1.msra.mxu0 0.0
  %318 = vmatprep.subr.mxu0 0.0
  %319 = vmatpush1.msra.mxu0 0.0
  %320 = vmatprep.subr.mxu0 0.0
  %321 = vmatpush1.msra.mxu0 0.0
  %322 = vmatprep.mubr.f32.mxu0 0.0
  %323 = vmatmul.mubr.f32.gmra.mrb[0].mxu0 %v192
  %v324 = vpop.f32.mrb[0].mxu0
  %v325 = vadd.f32 0.0, %v324
  %v326 = vpop.f32.mrb[0].mxu0
  %327 = vdwg.mxu0
  %328 = vmatprep.subr.mxu0 0.0
  %329 = vmatpush1.msra.mxu0 %v168
  %330 = vmatprep.subr.mxu0 0.0
  %331 = vmatpush1.msra.mxu0 %v169
  %332 = vmatprep.subr.mxu0 0.0
  %333 = vmatpush1.msra.mxu0 %v170
  %334 = vmatprep.subr.mxu0 0.0
  %335 = vmatpush1.msra.mxu0 %v171
  %336 = vmatprep.subr.mxu0 0.0
  %337 = vmatpush1.msra.mxu0 %v172
  %338 = vmatprep.subr.mxu0 0.0
  %339 = vmatpush1.msra.mxu0 %v173
  %340 = vmatprep.subr.mxu0 0.0
  %341 = vmatpush1.msra.mxu0 %v174
  %342 = vmatprep.subr.mxu0 0.0
  %343 = vmatpush1.msra.mxu0 %v175
  %344 = vmatprep.subr.mxu0 0.0
  %345 = vmatpush1.msra.mxu0 %v176
  %346 = vmatprep.subr.mxu0 0.0
  %347 = vmatpush1.msra.mxu0 %v177
  %348 = vmatprep.subr.mxu0 0.0
  %349 = vmatpush1.msra.mxu0 %v178
  %350 = vmatprep.subr.mxu0 0.0
  %351 = vmatpush1.msra.mxu0 %v179
  %352 = vmatprep.subr.mxu0 0.0
  %353 = vmatpush1.msra.mxu0 %v180
  %354 = vmatprep.subr.mxu0 0.0
  %355 = vmatpush1.msra.mxu0 %v181
  %356 = vmatprep.subr.mxu0 0.0
  %357 = vmatpush1.msra.mxu0 %v182
  %358 = vmatprep.subr.mxu0 0.0
  %359 = vmatpush1.msra.mxu0 %v183
  %360 = vmatprep.subr.mxu0 0.0
  %361 = vmatpush1.msra.mxu0 0.0
  %362 = vmatprep.subr.mxu0 0.0
  %363 = vmatpush1.msra.mxu0 0.0
  %364 = vmatprep.subr.mxu0 0.0
  %365 = vmatpush1.msra.mxu0 0.0
  %366 = vmatprep.subr.mxu0 0.0
  %367 = vmatpush1.msra.mxu0 0.0
  %368 = vmatprep.subr.mxu0 0.0
  %369 = vmatpush1.msra.mxu0 0.0
  %370 = vmatprep.subr.mxu0 0.0
  %371 = vmatpush1.msra.mxu0 0.0
  %372 = vmatprep.subr.mxu0 0.0
  %373 = vmatpush1.msra.mxu0 0.0
  %374 = vmatprep.subr.mxu0 0.0
  %375 = vmatpush1.msra.mxu0 0.0
  %376 = vmatprep.subr.mxu0 0.0
  %377 = vmatpush1.msra.mxu0 0.0
  %378 = vmatprep.subr.mxu0 0.0
  %379 = vmatpush1.msra.mxu0 0.0
  %380 = vmatprep.subr.mxu0 0.0
  %381 = vmatpush1.msra.mxu0 0.0
  %382 = vmatprep.subr.mxu0 0.0
  %383 = vmatpush1.msra.mxu0 0.0
  %384 = vmatprep.subr.mxu0 0.0
  %385 = vmatpush1.msra.mxu0 0.0
  %386 = vmatprep.subr.mxu0 0.0
  %387 = vmatpush1.msra.mxu0 0.0
  %388 = vmatprep.subr.mxu0 0.0
  %389 = vmatpush1.msra.mxu0 0.0
  %390 = vmatprep.subr.mxu0 0.0
  %391 = vmatpush1.msra.mxu0 0.0
  %392 = vmatprep.mubr.f32.mxu0 0.0
  %393 = vmatmul.mubr.f32.gmra.mrb[0].mxu0 %v167
  %v394 = vpop.f32.mrb[0].mxu0
  %v395 = vadd.f32 %v325, %v394
  %v396 = vpop.f32.mrb[0].mxu0
  %397 = vdwg.mxu0
  %v398 = vcombine.high %v167, %v167
  %v400 = vunpack.c.l.s4 1983009808
  %v401 = vunpack.c.0.s8 %v400
  %v402 = vlaneseq
  %v403 = vshrl.u32 %v402, 7
  %v404 = vsub.s32 %v401, %v403
  %v405 = vrot.slane %v398, %v404
  %407 = vrot.lane.b32.xlu0 %v168, 64
  %v408 = vpop.permute.xlu0 %407
  %409 = vrot.lane.b32.xlu0 %v169, 64
  %v410 = vpop.permute.xlu0 %409
  %411 = vrot.lane.b32.xlu0 %v170, 64
  %v412 = vpop.permute.xlu0 %411
  %413 = vrot.lane.b32.xlu0 %v171, 64
  %v414 = vpop.permute.xlu0 %413
  %415 = vrot.lane.b32.xlu0 %v172, 64
  %v416 = vpop.permute.xlu0 %415
  %417 = vrot.lane.b32.xlu0 %v173, 64
  %v418 = vpop.permute.xlu0 %417
  %419 = vrot.lane.b32.xlu0 %v174, 64
  %v420 = vpop.permute.xlu0 %419
  %421 = vrot.lane.b32.xlu0 %v175, 64
  %v422 = vpop.permute.xlu0 %421
  %423 = vrot.lane.b32.xlu0 %v176, 64
  %v424 = vpop.permute.xlu0 %423
  %425 = vrot.lane.b32.xlu0 %v177, 64
  %v426 = vpop.permute.xlu0 %425
  %427 = vrot.lane.b32.xlu0 %v178, 64
  %v428 = vpop.permute.xlu0 %427
  %429 = vrot.lane.b32.xlu0 %v179, 64
  %v430 = vpop.permute.xlu0 %429
  %431 = vrot.lane.b32.xlu0 %v180, 64
  %v432 = vpop.permute.xlu0 %431
  %433 = vrot.lane.b32.xlu0 %v181, 64
  %v434 = vpop.permute.xlu0 %433
  %435 = vrot.lane.b32.xlu0 %v182, 64
  %v436 = vpop.permute.xlu0 %435
  %437 = vrot.lane.b32.xlu0 %v183, 64
  %v438 = vpop.permute.xlu0 %437
  %455 = vmatprep.subr.mxu0 0.0
  %456 = vmatpush1.msra.mxu0 %v408
  %457 = vmatprep.subr.mxu0 0.0
  %458 = vmatpush1.msra.mxu0 %v410
  %459 = vmatprep.subr.mxu0 0.0
  %460 = vmatpush1.msra.mxu0 %v412
  %461 = vmatprep.subr.mxu0 0.0
  %462 = vmatpush1.msra.mxu0 %v414
  %463 = vmatprep.subr.mxu0 0.0
  %464 = vmatpush1.msra.mxu0 %v416
  %465 = vmatprep.subr.mxu0 0.0
  %466 = vmatpush1.msra.mxu0 %v418
  %467 = vmatprep.subr.mxu0 0.0
  %468 = vmatpush1.msra.mxu0 %v420
  %469 = vmatprep.subr.mxu0 0.0
  %470 = vmatpush1.msra.mxu0 %v422
  %471 = vmatprep.subr.mxu0 0.0
  %472 = vmatpush1.msra.mxu0 %v424
  %473 = vmatprep.subr.mxu0 0.0
  %474 = vmatpush1.msra.mxu0 %v426
  %475 = vmatprep.subr.mxu0 0.0
  %476 = vmatpush1.msra.mxu0 %v428
  %477 = vmatprep.subr.mxu0 0.0
  %478 = vmatpush1.msra.mxu0 %v430
  %479 = vmatprep.subr.mxu0 0.0
  %480 = vmatpush1.msra.mxu0 %v432
  %481 = vmatprep.subr.mxu0 0.0
  %482 = vmatpush1.msra.mxu0 %v434
  %483 = vmatprep.subr.mxu0 0.0
  %484 = vmatpush1.msra.mxu0 %v436
  %485 = vmatprep.subr.mxu0 0.0
  %486 = vmatpush1.msra.mxu0 %v438
  %487 = vmatprep.subr.mxu0 0.0
  %488 = vmatpush1.msra.mxu0 0.0
  %489 = vmatprep.subr.mxu0 0.0
  %490 = vmatpush1.msra.mxu0 0.0
  %491 = vmatprep.subr.mxu0 0.0
  %492 = vmatpush1.msra.mxu0 0.0
  %493 = vmatprep.subr.mxu0 0.0
  %494 = vmatpush1.msra.mxu0 0.0
  %495 = vmatprep.subr.mxu0 0.0
  %496 = vmatpush1.msra.mxu0 0.0
  %497 = vmatprep.subr.mxu0 0.0
  %498 = vmatpush1.msra.mxu0 0.0
  %499 = vmatprep.subr.mxu0 0.0
  %500 = vmatpush1.msra.mxu0 0.0
  %501 = vmatprep.subr.mxu0 0.0
  %502 = vmatpush1.msra.mxu0 0.0
  %503 = vmatprep.subr.mxu0 0.0
  %504 = vmatpush1.msra.mxu0 0.0
  %505 = vmatprep.subr.mxu0 0.0
  %506 = vmatpush1.msra.mxu0 0.0
  %507 = vmatprep.subr.mxu0 0.0
  %508 = vmatpush1.msra.mxu0 0.0
  %509 = vmatprep.subr.mxu0 0.0
  %510 = vmatpush1.msra.mxu0 0.0
  %511 = vmatprep.subr.mxu0 0.0
  %512 = vmatpush1.msra.mxu0 0.0
  %513 = vmatprep.subr.mxu0 0.0
  %514 = vmatpush1.msra.mxu0 0.0
  %515 = vmatprep.subr.mxu0 0.0
  %516 = vmatpush1.msra.mxu0 0.0
  %517 = vmatprep.subr.mxu0 0.0
  %518 = vmatpush1.msra.mxu0 0.0
  %519 = vmatprep.mubr.f32.mxu0 0.0
  %520 = vmatmul.mubr.f32.gmra.mrb[0].mxu0 %v405
  %v521 = vpop.f32.mrb[0].mxu0
  %v522 = vadd.f32 0.0, %v521
  %v523 = vpop.f32.mrb[0].mxu0
  %524 = vdwg.mxu0
  %v525 = vadd.f32 %v395, %v522
  %v526 = vcombine.high %v405, %v405
  %528 = vrot.lane.b32.xlu0 %v168, 32
  %v529 = vpop.permute.xlu0 %528
  %530 = vrot.lane.b32.xlu0 %v169, 32
  %v531 = vpop.permute.xlu0 %530
  %532 = vrot.lane.b32.xlu0 %v170, 32
  %v533 = vpop.permute.xlu0 %532
  %534 = vrot.lane.b32.xlu0 %v171, 32
  %v535 = vpop.permute.xlu0 %534
  %536 = vrot.lane.b32.xlu0 %v172, 32
  %v537 = vpop.permute.xlu0 %536
  %538 = vrot.lane.b32.xlu0 %v173, 32
  %v539 = vpop.permute.xlu0 %538
  %540 = vrot.lane.b32.xlu0 %v174, 32
  %v541 = vpop.permute.xlu0 %540
  %542 = vrot.lane.b32.xlu0 %v175, 32
  %v543 = vpop.permute.xlu0 %542
  %544 = vrot.lane.b32.xlu0 %v176, 32
  %v545 = vpop.permute.xlu0 %544
  %546 = vrot.lane.b32.xlu0 %v177, 32
  %v547 = vpop.permute.xlu0 %546
  %548 = vrot.lane.b32.xlu0 %v178, 32
  %v549 = vpop.permute.xlu0 %548
  %550 = vrot.lane.b32.xlu0 %v179, 32
  %v551 = vpop.permute.xlu0 %550
  %552 = vrot.lane.b32.xlu0 %v180, 32
  %v553 = vpop.permute.xlu0 %552
  %554 = vrot.lane.b32.xlu0 %v181, 32
  %v555 = vpop.permute.xlu0 %554
  %556 = vrot.lane.b32.xlu0 %v182, 32
  %v557 = vpop.permute.xlu0 %556
  %558 = vrot.lane.b32.xlu0 %v183, 32
  %v559 = vpop.permute.xlu0 %558
  %576 = vmatprep.subr.mxu0 0.0
  %577 = vmatpush1.msra.mxu0 %v529
  %578 = vmatprep.subr.mxu0 0.0
  %579 = vmatpush1.msra.mxu0 %v531
  %580 = vmatprep.subr.mxu0 0.0
  %581 = vmatpush1.msra.mxu0 %v533
  %582 = vmatprep.subr.mxu0 0.0
  %583 = vmatpush1.msra.mxu0 %v535
  %584 = vmatprep.subr.mxu0 0.0
  %585 = vmatpush1.msra.mxu0 %v537
  %586 = vmatprep.subr.mxu0 0.0
  %587 = vmatpush1.msra.mxu0 %v539
  %588 = vmatprep.subr.mxu0 0.0
  %589 = vmatpush1.msra.mxu0 %v541
  %590 = vmatprep.subr.mxu0 0.0
  %591 = vmatpush1.msra.mxu0 %v543
  %592 = vmatprep.subr.mxu0 0.0
  %593 = vmatpush1.msra.mxu0 %v545
  %594 = vmatprep.subr.mxu0 0.0
  %595 = vmatpush1.msra.mxu0 %v547
  %596 = vmatprep.subr.mxu0 0.0
  %597 = vmatpush1.msra.mxu0 %v549
  %598 = vmatprep.subr.mxu0 0.0
  %599 = vmatpush1.msra.mxu0 %v551
  %600 = vmatprep.subr.mxu0 0.0
  %601 = vmatpush1.msra.mxu0 %v553
  %602 = vmatprep.subr.mxu0 0.0
  %603 = vmatpush1.msra.mxu0 %v555
  %604 = vmatprep.subr.mxu0 0.0
  %605 = vmatpush1.msra.mxu0 %v557
  %606 = vmatprep.subr.mxu0 0.0
  %607 = vmatpush1.msra.mxu0 %v559
  %608 = vmatprep.subr.mxu0 0.0
  %609 = vmatpush1.msra.mxu0 0.0
  %610 = vmatprep.subr.mxu0 0.0
  %611 = vmatpush1.msra.mxu0 0.0
  %612 = vmatprep.subr.mxu0 0.0
  %613 = vmatpush1.msra.mxu0 0.0
  %614 = vmatprep.subr.mxu0 0.0
  %615 = vmatpush1.msra.mxu0 0.0
  %616 = vmatprep.subr.mxu0 0.0
  %617 = vmatpush1.msra.mxu0 0.0
  %618 = vmatprep.subr.mxu0 0.0
  %619 = vmatpush1.msra.mxu0 0.0
  %620 = vmatprep.subr.mxu0 0.0
  %621 = vmatpush1.msra.mxu0 0.0
  %622 = vmatprep.subr.mxu0 0.0
  %623 = vmatpush1.msra.mxu0 0.0
  %624 = vmatprep.subr.mxu0 0.0
  %625 = vmatpush1.msra.mxu0 0.0
  %626 = vmatprep.subr.mxu0 0.0
  %627 = vmatpush1.msra.mxu0 0.0
  %628 = vmatprep.subr.mxu0 0.0
  %629 = vmatpush1.msra.mxu0 0.0
  %630 = vmatprep.subr.mxu0 0.0
  %631 = vmatpush1.msra.mxu0 0.0
  %632 = vmatprep.subr.mxu0 0.0
  %633 = vmatpush1.msra.mxu0 0.0
  %634 = vmatprep.subr.mxu0 0.0
  %635 = vmatpush1.msra.mxu0 0.0
  %636 = vmatprep.subr.mxu0 0.0
  %637 = vmatpush1.msra.mxu0 0.0
  %638 = vmatprep.subr.mxu0 0.0
  %639 = vmatpush1.msra.mxu0 0.0
  %640 = vmatprep.mubr.f32.mxu0 0.0
  %641 = vmatmul.mubr.f32.gmra.mrb[0].mxu0 %v526
  %v642 = vpop.f32.mrb[0].mxu0
  %v643 = vadd.f32 0.0, %v642
  %v644 = vpop.f32.mrb[0].mxu0
  %645 = vdwg.mxu0
  %v646 = vadd.f32 %v525, %v643
  %v647 = vld [vmem:[%s1 + $0xe8] sm:$0x1]
  %v648 = vlaneseq
  %v649 = vshrl.u32 %v648, 7
  %v650 = vsub.s32 0, %v649
  %v651 = vrot.slane %v647, %v650
  %v652 = vadd.f32 %v646, %v651
  %v653 = vmax.f32 %v652, 0.0
  %v654 = vld [vmem:[%s0 + $0x28] sm:$0x3]
  %v655 = vld [vmem:[%s1 + $0x88] sm:$0xff]
  %v656 = vld [vmem:[%s1 + $0x90] sm:$0x1]
  %vm657 = vcmask 72704
  %v659 = vsel %vm657, %v654, 0
  %vm661 = vcmask 1040384
  %v663 = vsel %vm661, %v656, 0
  %665 = vmatprep.subr.mxu0 0.0
  %666 = vmatpush1.msra.mxu0 %v655
  %667 = vmatprep.subr.mxu0 0.0
  %668 = vmatpush1.msra.mxu0 %v663
  %669 = vmatprep.subr.mxu0 0.0
  %670 = vmatpush1.msra.mxu0 0.0
  %671 = vmatprep.subr.mxu0 0.0
  %672 = vmatpush1.msra.mxu0 0.0
  %673 = vmatprep.subr.mxu0 0.0
  %674 = vmatpush1.msra.mxu0 0.0
  %675 = vmatprep.subr.mxu0 0.0
  %676 = vmatpush1.msra.mxu0 0.0
  %677 = vmatprep.subr.mxu0 0.0
  %678 = vmatpush1.msra.mxu0 0.0
  %679 = vmatprep.subr.mxu0 0.0
  %680 = vmatpush1.msra.mxu0 0.0
  %681 = vmatprep.subr.mxu0 0.0
  %682 = vmatpush1.msra.mxu0 0.0
  %683 = vmatprep.subr.mxu0 0.0
  %684 = vmatpush1.msra.mxu0 0.0
  %685 = vmatprep.subr.mxu0 0.0
  %686 = vmatpush1.msra.mxu0 0.0
  %687 = vmatprep.subr.mxu0 0.0
  %688 = vmatpush1.msra.mxu0 0.0
  %689 = vmatprep.subr.mxu0 0.0
  %690 = vmatpush1.msra.mxu0 0.0
  %691 = vmatprep.subr.mxu0 0.0
  %692 = vmatpush1.msra.mxu0 0.0
  %693 = vmatprep.subr.mxu0 0.0
  %694 = vmatpush1.msra.mxu0 0.0
  %695 = vmatprep.subr.mxu0 0.0
  %696 = vmatpush1.msra.mxu0 0.0
  %697 = vmatprep.subr.mxu0 0.0
  %698 = vmatpush1.msra.mxu0 0.0
  %699 = vmatprep.subr.mxu0 0.0
  %700 = vmatpush1.msra.mxu0 0.0
  %701 = vmatprep.subr.mxu0 0.0
  %702 = vmatpush1.msra.mxu0 0.0
  %703 = vmatprep.subr.mxu0 0.0
  %704 = vmatpush1.msra.mxu0 0.0
  %705 = vmatprep.subr.mxu0 0.0
  %706 = vmatpush1.msra.mxu0 0.0
  %707 = vmatprep.subr.mxu0 0.0
  %708 = vmatpush1.msra.mxu0 0.0
  %709 = vmatprep.subr.mxu0 0.0
  %710 = vmatpush1.msra.mxu0 0.0
  %711 = vmatprep.subr.mxu0 0.0
  %712 = vmatpush1.msra.mxu0 0.0
  %713 = vmatprep.subr.mxu0 0.0
  %714 = vmatpush1.msra.mxu0 0.0
  %715 = vmatprep.subr.mxu0 0.0
  %716 = vmatpush1.msra.mxu0 0.0
  %717 = vmatprep.subr.mxu0 0.0
  %718 = vmatpush1.msra.mxu0 0.0
  %719 = vmatprep.subr.mxu0 0.0
  %720 = vmatpush1.msra.mxu0 0.0
  %721 = vmatprep.subr.mxu0 0.0
  %722 = vmatpush1.msra.mxu0 0.0
  %723 = vmatprep.subr.mxu0 0.0
  %724 = vmatpush1.msra.mxu0 0.0
  %725 = vmatprep.subr.mxu0 0.0
  %726 = vmatpush1.msra.mxu0 0.0
  %727 = vmatprep.subr.mxu0 0.0
  %728 = vmatpush1.msra.mxu0 0.0
  %729 = vmatprep.mubr.f32.mxu0 0.0
  %730 = vmatmul.mubr.f32.gmra.mrb[0].mxu0 %v659
  %v731 = vpop.f32.mrb[0].mxu0
  %v732 = vadd.f32 0.0, %v731
  %v733 = vpop.f32.mrb[0].mxu0
  %734 = vdwg.mxu0
  %v735 = vmax.f32 %v732, 0.0
  %v736 = vld [vmem:[%s1 + $0x98] sm:$0xff]
  %v737 = vld [vmem:[%s1 + $0xa0] sm:$0xff]
  %v738 = vld [vmem:[%s1 + $0xa8] sm:$0xff]
  %v739 = vld [vmem:[%s1 + $0xb0] sm:$0xff]
  %v740 = vld [vmem:[%s1 + $0xb8] sm:$0xff]
  %v741 = vld [vmem:[%s1 + $0xc0] sm:$0xff]
  %vm742 = vcmask 130048
  %v744 = vsel %vm742, %v735, 0
  %746 = vmatprep.subr.mxu0 0.0
  %747 = vmatpush1.msra.mxu0 %v740
  %748 = vmatprep.subr.mxu0 0.0
  %749 = vmatpush1.msra.mxu0 %v741
  %750 = vmatprep.subr.mxu0 0.0
  %751 = vmatpush1.msra.mxu0 0.0
  %752 = vmatprep.subr.mxu0 0.0
  %753 = vmatpush1.msra.mxu0 0.0
  %754 = vmatprep.subr.mxu0 0.0
  %755 = vmatpush1.msra.mxu0 0.0
  %756 = vmatprep.subr.mxu0 0.0
  %757 = vmatpush1.msra.mxu0 0.0
  %758 = vmatprep.subr.mxu0 0.0
  %759 = vmatpush1.msra.mxu0 0.0
  %760 = vmatprep.subr.mxu0 0.0
  %761 = vmatpush1.msra.mxu0 0.0
  %762 = vmatprep.subr.mxu0 0.0
  %763 = vmatpush1.msra.mxu0 0.0
  %764 = vmatprep.subr.mxu0 0.0
  %765 = vmatpush1.msra.mxu0 0.0
  %766 = vmatprep.subr.mxu0 0.0
  %767 = vmatpush1.msra.mxu0 0.0
  %768 = vmatprep.subr.mxu0 0.0
  %769 = vmatpush1.msra.mxu0 0.0
  %770 = vmatprep.subr.mxu0 0.0
  %771 = vmatpush1.msra.mxu0 0.0
  %772 = vmatprep.subr.mxu0 0.0
  %773 = vmatpush1.msra.mxu0 0.0
  %774 = vmatprep.subr.mxu0 0.0
  %775 = vmatpush1.msra.mxu0 0.0
  %776 = vmatprep.subr.mxu0 0.0
  %777 = vmatpush1.msra.mxu0 0.0
  %778 = vmatprep.subr.mxu0 0.0
  %779 = vmatpush1.msra.mxu0 0.0
  %780 = vmatprep.subr.mxu0 0.0
  %781 = vmatpush1.msra.mxu0 0.0
  %782 = vmatprep.subr.mxu0 0.0
  %783 = vmatpush1.msra.mxu0 0.0
  %784 = vmatprep.subr.mxu0 0.0
  %785 = vmatpush1.msra.mxu0 0.0
  %786 = vmatprep.subr.mxu0 0.0
  %787 = vmatpush1.msra.mxu0 0.0
  %788 = vmatprep.subr.mxu0 0.0
  %789 = vmatpush1.msra.mxu0 0.0
  %790 = vmatprep.subr.mxu0 0.0
  %791 = vmatpush1.msra.mxu0 0.0
  %792 = vmatprep.subr.mxu0 0.0
  %793 = vmatpush1.msra.mxu0 0.0
  %794 = vmatprep.subr.mxu0 0.0
  %795 = vmatpush1.msra.mxu0 0.0
  %796 = vmatprep.subr.mxu0 0.0
  %797 = vmatpush1.msra.mxu0 0.0
  %798 = vmatprep.subr.mxu0 0.0
  %799 = vmatpush1.msra.mxu0 0.0
  %800 = vmatprep.subr.mxu0 0.0
  %801 = vmatpush1.msra.mxu0 0.0
  %802 = vmatprep.subr.mxu0 0.0
  %803 = vmatpush1.msra.mxu0 0.0
  %804 = vmatprep.subr.mxu0 0.0
  %805 = vmatpush1.msra.mxu0 0.0
  %806 = vmatprep.subr.mxu0 0.0
  %807 = vmatpush1.msra.mxu0 0.0
  %808 = vmatprep.subr.mxu0 0.0
  %809 = vmatpush1.msra.mxu0 0.0
  %810 = vmatprep.mubr.f32.mxu0 0.0
  %811 = vmatmul.mubr.f32.gmra.mrb[0].mxu0 %v744
  %v812 = vpop.f32.mrb[0].mxu0
  %v813 = vadd.f32 0.0, %v812
  %v814 = vpop.f32.mrb[0].mxu0
  %815 = vdwg.mxu0
  %vm816 = vcmask 261120
  %v818 = vsel %vm816, %v653, 0
  %820 = vmatprep.subr.mxu0 0.0
  %821 = vmatpush1.msra.mxu0 %v736
  %822 = vmatprep.subr.mxu0 0.0
  %823 = vmatpush1.msra.mxu0 %v737
  %824 = vmatprep.subr.mxu0 0.0
  %825 = vmatpush1.msra.mxu0 %v738
  %826 = vmatprep.subr.mxu0 0.0
  %827 = vmatpush1.msra.mxu0 %v739
  %828 = vmatprep.subr.mxu0 0.0
  %829 = vmatpush1.msra.mxu0 0.0
  %830 = vmatprep.subr.mxu0 0.0
  %831 = vmatpush1.msra.mxu0 0.0
  %832 = vmatprep.subr.mxu0 0.0
  %833 = vmatpush1.msra.mxu0 0.0
  %834 = vmatprep.subr.mxu0 0.0
  %835 = vmatpush1.msra.mxu0 0.0
  %836 = vmatprep.subr.mxu0 0.0
  %837 = vmatpush1.msra.mxu0 0.0
  %838 = vmatprep.subr.mxu0 0.0
  %839 = vmatpush1.msra.mxu0 0.0
  %840 = vmatprep.subr.mxu0 0.0
  %841 = vmatpush1.msra.mxu0 0.0
  %842 = vmatprep.subr.mxu0 0.0
  %843 = vmatpush1.msra.mxu0 0.0
  %844 = vmatprep.subr.mxu0 0.0
  %845 = vmatpush1.msra.mxu0 0.0
  %846 = vmatprep.subr.mxu0 0.0
  %847 = vmatpush1.msra.mxu0 0.0
  %848 = vmatprep.subr.mxu0 0.0
  %849 = vmatpush1.msra.mxu0 0.0
  %850 = vmatprep.subr.mxu0 0.0
  %851 = vmatpush1.msra.mxu0 0.0
  %852 = vmatprep.subr.mxu0 0.0
  %853 = vmatpush1.msra.mxu0 0.0
  %854 = vmatprep.subr.mxu0 0.0
  %855 = vmatpush1.msra.mxu0 0.0
  %856 = vmatprep.subr.mxu0 0.0
  %857 = vmatpush1.msra.mxu0 0.0
  %858 = vmatprep.subr.mxu0 0.0
  %859 = vmatpush1.msra.mxu0 0.0
  %860 = vmatprep.subr.mxu0 0.0
  %861 = vmatpush1.msra.mxu0 0.0
  %862 = vmatprep.subr.mxu0 0.0
  %863 = vmatpush1.msra.mxu0 0.0
  %864 = vmatprep.subr.mxu0 0.0
  %865 = vmatpush1.msra.mxu0 0.0
  %866 = vmatprep.subr.mxu0 0.0
  %867 = vmatpush1.msra.mxu0 0.0
  %868 = vmatprep.subr.mxu0 0.0
  %869 = vmatpush1.msra.mxu0 0.0
  %870 = vmatprep.subr.mxu0 0.0
  %871 = vmatpush1.msra.mxu0 0.0
  %872 = vmatprep.subr.mxu0 0.0
  %873 = vmatpush1.msra.mxu0 0.0
  %874 = vmatprep.subr.mxu0 0.0
  %875 = vmatpush1.msra.mxu0 0.0
  %876 = vmatprep.subr.mxu0 0.0
  %877 = vmatpush1.msra.mxu0 0.0
  %878 = vmatprep.subr.mxu0 0.0
  %879 = vmatpush1.msra.mxu0 0.0
  %880 = vmatprep.subr.mxu0 0.0
  %881 = vmatpush1.msra.mxu0 0.0
  %882 = vmatprep.subr.mxu0 0.0
  %883 = vmatpush1.msra.mxu0 0.0
  %884 = vmatprep.mubr.f32.mxu0 0.0
  %885 = vmatmul.mubr.f32.gmra.mrb[0].mxu0 %v818
  %v886 = vpop.f32.mrb[0].mxu0
  %v887 = vadd.f32 %v813, %v886
  %v888 = vpop.f32.mrb[0].mxu0
  %889 = vdwg.mxu0
  %v890 = vld [vmem:[%s1 + $0xe9] sm:$0x1]
  %v891 = vlaneseq
  %v892 = vshrl.u32 %v891, 7
  %v893 = vsub.s32 0, %v892
  %v894 = vrot.slane %v890, %v893
  %v895 = vadd.f32 %v887, %v894
  %v896 = vmax.f32 %v895, 0.0
  %v897 = vld [vmem:[%s1 + $0xc8] sm:$0xff]
  %v898 = vld [vmem:[%s1 + $0xd0] sm:$0xff]
  %v899 = vld [vmem:[%s1 + $0xd8] sm:$0xff]
  %v900 = vld [vmem:[%s1 + $0xe0] sm:$0xff]
  %v902 = vsel %vm816, %v896, 0
  %904 = vmatprep.subr.mxu0 0.0
  %905 = vmatpush1.msra.mxu0 %v897
  %906 = vmatprep.subr.mxu0 0.0
  %907 = vmatpush1.msra.mxu0 %v898
  %908 = vmatprep.subr.mxu0 0.0
  %909 = vmatpush1.msra.mxu0 %v899
  %910 = vmatprep.subr.mxu0 0.0
  %911 = vmatpush1.msra.mxu0 %v900
  %912 = vmatprep.subr.mxu0 0.0
  %913 = vmatpush1.msra.mxu0 0.0
  %914 = vmatprep.subr.mxu0 0.0
  %915 = vmatpush1.msra.mxu0 0.0
  %916 = vmatprep.subr.mxu0 0.0
  %917 = vmatpush1.msra.mxu0 0.0
  %918 = vmatprep.subr.mxu0 0.0
  %919 = vmatpush1.msra.mxu0 0.0
  %920 = vmatprep.subr.mxu0 0.0
  %921 = vmatpush1.msra.mxu0 0.0
  %922 = vmatprep.subr.mxu0 0.0
  %923 = vmatpush1.msra.mxu0 0.0
  %924 = vmatprep.subr.mxu0 0.0
  %925 = vmatpush1.msra.mxu0 0.0
  %926 = vmatprep.subr.mxu0 0.0
  %927 = vmatpush1.msra.mxu0 0.0
  %928 = vmatprep.subr.mxu0 0.0
  %929 = vmatpush1.msra.mxu0 0.0
  %930 = vmatprep.subr.mxu0 0.0
  %931 = vmatpush1.msra.mxu0 0.0
  %932 = vmatprep.subr.mxu0 0.0
  %933 = vmatpush1.msra.mxu0 0.0
  %934 = vmatprep.subr.mxu0 0.0
  %935 = vmatpush1.msra.mxu0 0.0
  %936 = vmatprep.subr.mxu0 0.0
  %937 = vmatpush1.msra.mxu0 0.0
  %938 = vmatprep.subr.mxu0 0.0
  %939 = vmatpush1.msra.mxu0 0.0
  %940 = vmatprep.subr.mxu0 0.0
  %941 = vmatpush1.msra.mxu0 0.0
  %942 = vmatprep.subr.mxu0 0.0
  %943 = vmatpush1.msra.mxu0 0.0
  %944 = vmatprep.subr.mxu0 0.0
  %945 = vmatpush1.msra.mxu0 0.0
  %946 = vmatprep.subr.mxu0 0.0
  %947 = vmatpush1.msra.mxu0 0.0
  %948 = vmatprep.subr.mxu0 0.0
  %949 = vmatpush1.msra.mxu0 0.0
  %950 = vmatprep.subr.mxu0 0.0
  %951 = vmatpush1.msra.mxu0 0.0
  %952 = vmatprep.subr.mxu0 0.0
  %953 = vmatpush1.msra.mxu0 0.0
  %954 = vmatprep.subr.mxu0 0.0
  %955 = vmatpush1.msra.mxu0 0.0
  %956 = vmatprep.subr.mxu0 0.0
  %957 = vmatpush1.msra.mxu0 0.0
  %958 = vmatprep.subr.mxu0 0.0
  %959 = vmatpush1.msra.mxu0 0.0
  %960 = vmatprep.subr.mxu0 0.0
  %961 = vmatpush1.msra.mxu0 0.0
  %962 = vmatprep.subr.mxu0 0.0
  %963 = vmatpush1.msra.mxu0 0.0
  %964 = vmatprep.subr.mxu0 0.0
  %965 = vmatpush1.msra.mxu0 0.0
  %966 = vmatprep.subr.mxu0 0.0
  %967 = vmatpush1.msra.mxu0 0.0
  %968 = vmatprep.mubr.f32.mxu0 0.0
  %969 = vmatmul.mubr.f32.gmra.mrb[0].mxu0 %v902
  %v970 = vpop.f32.mrb[0].mxu0
  %v971 = vadd.f32 0.0, %v970
  %v972 = vpop.f32.mrb[0].mxu0
  %973 = vdwg.mxu0
  %v974 = vld [vmem:[%s1 + $0xea] sm:$0x1]
  %v975 = vlaneseq
  %v976 = vshrl.u32 %v975, 7
  %v977 = vsub.s32 0, %v976
  %v978 = vrot.slane %v974, %v977
  %v979 = vadd.f32 %v971, %v978
  %v980 = vxor.u32 %v979, 2147483648
  %v981 = vmul.f32 %v980, 1.442695
  %v982 = vpow.pop %v981
  %v983 = vadd.f32 %v982, 1.0
  %v984 = vrcp.pop %v983
  %v985 = vmul.f32 1.0, %v984
  %v986 = vld [vmem:[%s1 + $0xeb] sm:$0x1]
  %v987 = vlaneseq
  %v988 = vshrl.u32 %v987, 7
  %v989 = vsub.s32 0, %v988
  %v990 = vrot.slane %v986, %v989
  %992 = vrot.lane.b32.xlu0 %v990, 32
  %v993 = vpop.permute.xlu0 %992
  %v995 = vadd.f32 %v971, %v993
  %v996 = vxor.u32 %v995, 2147483648
  %v997 = vmul.f32 %v996, 1.442695
  %v998 = vpow.pop %v997
  %v999 = vadd.f32 %v998, 1.0
  %v1000 = vrcp.pop %v999
  %v1001 = vmul.f32 1.0, %v1000
  %v1002 = vld [vmem:[%s1 + $0xec] sm:$0x1]
  %v1003 = vlaneseq
  %v1004 = vshrl.u32 %v1003, 7
  %v1005 = vsub.s32 0, %v1004
  %v1006 = vrot.slane %v1002, %v1005
  %1008 = vrot.lane.b32.xlu0 %v1006, 64
  %v1009 = vpop.permute.xlu0 %1008
  %v1011 = vadd.f32 %v971, %v1009
  %v1012 = vld [vmem:[%s1 + $0xed] sm:$0x1]
  %v1013 = vlaneseq
  %v1014 = vshrl.u32 %v1013, 7
  %v1015 = vsub.s32 0, %v1014
  %v1016 = vrot.slane %v1012, %v1015
  %v1017 = vmul.f32 %v985, %v1016
  %1019 = vrot.lane.b32.xlu0 %v1017, 64
  %v1020 = vpop.permute.xlu0 %1019
  %v1022 = vadd.f32 %v1011, %v1020
  %v1023 = vtanh.pop %v1022
  %v1024 = vsub.f32 1.0, %v1001
  %1026 = vrot.lane.b32.xlu0 %v1023, 96
  %v1027 = vpop.permute.xlu0 %1026
  %v1029 = vmul.f32 %v1024, %v1027
  %v1030 = vld [vmem:[%s1 + $0xee] sm:$0x1]
  %v1031 = vlaneseq
  %v1032 = vshrl.u32 %v1031, 7
  %v1033 = vsub.s32 0, %v1032
  %v1034 = vrot.slane %v1030, %v1033
  %1036 = vrot.lane.b32.xlu0 %v1034, 32
  %v1037 = vpop.permute.xlu0 %1036
  %v1039 = vmul.f32 %v1029, %v1037
  %1041 = vrot.lane.b32.xlu0 %v1039, 96
  %v1042 = vpop.permute.xlu0 %1041
  %vm1044 = vcmask 254976
  %v1045 = vsel %vm1044, %v1042, 0.0
  %1046 = vadd.xlane.f32.xlu0 %v1045
  %v1047 = vpop.xlane.xlu0 %1046
  %v1048 = vld [vmem:[%s1 + $0xef] sm:$0x1]
  %v1049 = vlaneseq
  %v1050 = vshrl.u32 %v1049, 7
  %v1051 = vsub.s32 0, %v1050
  %v1052 = vrot.slane %v1048, %v1051
  %v1053 = vadd.f32 %v1047, %v1052
  %vm1054 = vcmask 1024
  %1055 = vst.msk [vmem:[%s2] sm:$0x3] %vm1054, %v1053
  // Predicated region
  $region10: #{measured_value_ffn.1} parent=0 // pred_check
    _
  $region11: #{measured_value_ffn.1} parent=0 // pred_check_branch
    %1057 = sbr.rel (0) target = $region13
  $region12: #{measured_value_ffn.1} parent=0 // pred_region
    _
  $region13: #{measured_value_ffn.1} parent=0 // pred_fallthru
    _
  // Predicated region
  $region14: #{measured_value_ffn.1} parent=0 // pred_check
    _
  $region15: #{measured_value_ffn.1} parent=0 // pred_check_branch
    %1059 = sbr.rel (0) target = $region17
  $region16: #{measured_value_ffn.1} parent=0 // pred_region
    _
  $region17: #{measured_value_ffn.1} parent=0 // pred_fallthru
    _

</llo_original>
